<compile_context>
chip_gen: v5e
topology: v5e:2x2
jax: 0.10.0
libtpu: 0.0.40
codegen_flags: <defaults>
</compile_context>

<pallas_src>
import jax
import jax.numpy as jnp
from jax import lax
from jax.experimental import pallas as pl

# ---------------- config (small synthetic shapes) ----------------
B = 2              # batch
C = 3              # image channels
IMG = 16           # image height/width
PS = 8             # patch size
P = (IMG // PS) ** 2   # 4 patches
S = P + 1              # +CLS token -> 5 tokens
BS = B * S             # 10 rows in the fused token slab
D = 32             # hidden size
H = 2              # attention heads
HD = D // H        # head dim = 16
MLP = 64           # MLP hidden
NCLS = 10          # number of classes
PATCH_DIM = C * PS * PS   # 192
LN_EPS = 1e-12     # HF ViT default
LANES = 128        # lane width for packed vectors / padded outputs
NVEC = 11 + 2 * BS     # 11 small vectors + token bias rows + attn-mask rows

# rough static cost estimate (flops of all matmuls, transcendental count)
_FLOPS = 2 * (BS * PATCH_DIM * D          # patch embedding
              + BS * D * 3 * D            # fused QKV projection
              + 2 * H * BS * BS * HD      # attention scores + context
              + BS * D * D                # attention output projection
              + 2 * BS * D * MLP          # MLP
              + B * D * LANES)            # classifier head
_TRANS = H * BS * BS + BS * MLP + H * BS  # exp + tanh(gelu) + reciprocal


# ---------------- in-kernel math helpers ----------------
def _layernorm(x, g, b):
    mu = jnp.mean(x, axis=-1, keepdims=True)
    xc = x - mu
    var = jnp.mean(xc * xc, axis=-1, keepdims=True)
    return xc * lax.rsqrt(var + LN_EPS) * g + b


def _gelu(x):
    # TODO(synk): exact erf-GELU (HF ViT default) once Mosaic erf lowering is
    # confirmed; tanh-approximate GELU used here (EUP-friendly, ~1e-3 diff).
    c = 0.7978845608028654  # sqrt(2/pi)
    return 0.5 * x * (1.0 + jnp.tanh(c * (x + 0.044715 * x * x * x)))


# ---------------- single fused forward kernel ----------------
def _fused_forward_kernel(xp_ref, wpatch_ref, wqkv_ref, wo_ref, w1_ref,
                          w2_ref, wc_ref, vec_ref,
                          logits_ref, pooler_ref):
    f32 = jnp.float32
    bf16 = jnp.bfloat16

    # ---- unpack small vectors (one lane-dense [NVEC, 128] ref) ----
    vecs = vec_ref[...]
    ln1_g, ln1_b = vecs[0:1, :D], vecs[1:2, :D]
    bqkv = vecs[2:3, :3 * D]
    bo = vecs[3:4, :D]
    ln2_g, ln2_b = vecs[4:5, :D], vecs[5:6, :D]
    b1 = vecs[6:7, :MLP]
    b2 = vecs[7:8, :D]
    lnf_g, lnf_b = vecs[8:9, :D], vecs[9:10, :D]
    bc = vecs[10:11, :]                                  # [1, 128]
    tok_bias = vecs[11:11 + BS, :D]                      # [BS, D] (cls/pos/patch-bias)
    neg = vecs[11 + BS:11 + 2 * BS, :BS]                 # [BS, BS] block-diag mask bias

    # ---- patch embedding on the full [B*S] slab (CLS rows are zero patches)
    emb = jnp.dot(xp_ref[...], wpatch_ref[...], preferred_element_type=f32)
    x0 = emb + tok_bias                                  # [BS, D]

    # ---- pre-LN multi-head self-attention, fully batched across B ----
    xn = _layernorm(x0, ln1_g, ln1_b)
    qkv = jnp.dot(xn.astype(bf16), wqkv_ref[...],
                  preferred_element_type=f32) + bqkv     # [BS, 3D]

    scale = 1.0 / (HD ** 0.5)
    ctx_heads = []
    for hh in range(H):                                  # static unroll over heads
        q_h = qkv[:, hh * HD:(hh + 1) * HD]
        k_h = qkv[:, D + hh * HD:D + (hh + 1) * HD]
        v_h = qkv[:, 2 * D + hh * HD:2 * D + (hh + 1) * HD]
        # contract dim 1 of both operands: no explicit transpose
        s = lax.dot_general(q_h.astype(bf16), k_h.astype(bf16),
                            (((1,), (1,)), ((), ())),
                            preferred_element_type=f32) * scale + neg
        s = s - jnp.max(s, axis=-1, keepdims=True)
        p_ = jnp.exp(s)
        p_ = p_ * pl.reciprocal(jnp.sum(p_, axis=-1, keepdims=True), approx=True)
        ctx_heads.append(jnp.dot(p_.astype(bf16), v_h.astype(bf16),
                                 preferred_element_type=f32))
    ctx = jnp.concatenate(ctx_heads, axis=1)             # [BS, D]
    attn = jnp.dot(ctx.astype(bf16), wo_ref[...],
                   preferred_element_type=f32) + bo      # single fused out-proj
    x1 = x0 + attn                                       # residual 1

    # ---- pre-LN MLP ----
    xn2 = _layernorm(x1, ln2_g, ln2_b)
    hmid = _gelu(jnp.dot(xn2.astype(bf16), w1_ref[...],
                         preferred_element_type=f32) + b1)
    x2 = x1 + jnp.dot(hmid.astype(bf16), w2_ref[...],
                      preferred_element_type=f32) + b2   # residual 2

    # ---- head: gather CLS rows (pre-final-LN) ----
    cls = jnp.concatenate([x2[b * S:b * S + 1, :] for b in range(B)], axis=0)

    # pooler output: lane-dense [B, 128] store (sliced to [:, :D] outside)
    pooler_ref[...] = jnp.concatenate(
        [cls, jnp.zeros((B, LANES - D), f32)], axis=1)

    # logits = classifier(LayerNorm(CLS)); lane-dense [B, 128] store
    cls_n = _layernorm(cls, lnf_g, lnf_b)
    logits_ref[...] = jnp.dot(cls_n.astype(bf16), wc_ref[...],
                              preferred_element_type=f32) + bc


def _fused_forward_call(xp, kp):
    operands = (xp, kp["w_patch"], kp["wqkv"], kp["wo"], kp["w1"], kp["w2"],
                kp["wc_pad"], kp["vecs"])
    bytes_accessed = (sum(int(a.size) * a.dtype.itemsize for a in operands)
                      + 2 * B * LANES * 4)
    # No grid: single invocation, whole-array VMEM operands, no double-buffering.
    return pl.pallas_call(
        _fused_forward_kernel,
        out_shape=(jax.ShapeDtypeStruct((B, LANES), jnp.float32),   # logits (padded)
                   jax.ShapeDtypeStruct((B, LANES), jnp.float32)),  # pooler (padded)
        cost_estimate=pl.CostEstimate(flops=_FLOPS,
                                      transcendentals=_TRANS,
                                      bytes_accessed=bytes_accessed),
    )(*operands)


# ---------------- glue ----------------
def extract_patches_with_cls(x):
    # x: [B, C, IMG, IMG] (NCHW) -> [B*S, C*PS*PS] with a zero "CLS patch"
    # row prepended per image so the patch-embed matmul yields all B*S tokens.
    bb, cc, hh, ww = x.shape
    gh, gw = hh // PS, ww // PS
    xp = x.reshape(bb, cc, gh, PS, gw, PS)
    xp = xp.transpose(0, 2, 4, 1, 3, 5).reshape(bb, gh * gw, cc * PS * PS)
    cls0 = jnp.zeros((bb, 1, cc * PS * PS), xp.dtype)
    return jnp.concatenate([cls0, xp], axis=1).reshape(bb * (gh * gw + 1), -1)


@jax.jit
def wrapped_backbone_forward(x, kparams):
    xp = extract_patches_with_cls(x).astype(jnp.bfloat16)
    logits_pad, pooler_pad = _fused_forward_call(xp, kparams)
    # WrappedBackboneOutput fields: (logits, pooler_output)
    return logits_pad[:, :NCLS], pooler_pad[:, :D]


# ---------------- deterministic parameter init ----------------
def init_params(key):
    keys = jax.random.split(key, 10)

    def n(k, shape, scale=0.02):
        return (scale * jax.random.normal(k, shape)).astype(jnp.float32)

    z = lambda *s: jnp.zeros(s, jnp.float32)
    o = lambda *s: jnp.ones(s, jnp.float32)
    return dict(
        w_patch=n(keys[0], (PATCH_DIM, D)), b_patch=z(1, D),
        cls_token=n(keys[1], (1, 1, D)),
        pos_emb=n(keys[2], (1, S, D)),
        ln1_g=o(1, D), ln1_b=z(1, D),
        wq=n(keys[3], (D, D)), bq=z(1, D),
        wk=n(keys[4], (D, D)), bk=z(1, D),
        wv=n(keys[5], (D, D)), bv=z(1, D),
        wo=n(keys[6], (D, D)), bo=z(1, D),
        ln2_g=o(1, D), ln2_b=z(1, D),
        w1=n(keys[7], (D, MLP)), b1=z(1, MLP),
        w2=n(keys[8], (MLP, D)), b2=z(1, D),
        lnf_g=o(1, D), lnf_b=z(1, D),
        wc=n(keys[9], (D, NCLS)), bc=z(1, NCLS),
    )


def prepare_params(p):
    """One-time packing of params into the fused-kernel operand layout."""
    def pad_row(v):
        v = jnp.asarray(v, jnp.float32).reshape(1, -1)
        return jnp.pad(v, ((0, 0), (0, LANES - v.shape[1])))

    # QKV fused projection
    wqkv = jnp.concatenate([p["wq"], p["wk"], p["wv"]], axis=1)      # [D, 3D]
    bqkv = jnp.concatenate([p["bq"], p["bk"], p["bv"]], axis=1)      # [1, 3D]

    # Token bias per slab row: CLS row = cls_token + pos_emb[0];
    # patch rows = pos_emb[i] + b_patch (patch-embed bias folded in, since the
    # zero CLS-patch row must not receive it).  Tiled across the batch.
    row0 = p["cls_token"][0, 0:1] + p["pos_emb"][0, 0:1]             # [1, D]
    rows = p["pos_emb"][0, 1:] + p["b_patch"]                        # [P, D]
    tok_bias = jnp.concatenate([row0, rows], axis=0)                 # [S, D]
    tok_full = jnp.tile(tok_bias, (B, 1))                            # [BS, D]
    tok_pad = jnp.pad(tok_full, ((0, 0), (0, LANES - D)))            # [BS, 128]

    # Block-diagonal attention mask bias (0 within a batch, -1e30 across).
    bid = jnp.arange(BS) // S
    neg = jnp.where(bid[:, None] == bid[None, :], 0.0, -1e30).astype(jnp.float32)
    neg_pad = jnp.pad(neg, ((0, 0), (0, LANES - BS)))                # [BS, 128]

    vecs = jnp.concatenate(
        [pad_row(p["ln1_g"]), pad_row(p["ln1_b"]),   # 0, 1
         pad_row(bqkv),                              # 2
         pad_row(p["bo"]),                           # 3
         pad_row(p["ln2_g"]), pad_row(p["ln2_b"]),   # 4, 5
         pad_row(p["b1"]),                           # 6
         pad_row(p["b2"]),                           # 7
         pad_row(p["lnf_g"]), pad_row(p["lnf_b"]),   # 8, 9
         pad_row(p["bc"]),                           # 10
         tok_pad,                                    # 11 .. 11+BS-1
         neg_pad],                                   # 11+BS .. 11+2BS-1
        axis=0)                                      # [NVEC, 128] float32

    wc_pad = jnp.pad(p["wc"], ((0, 0), (0, LANES - NCLS)))           # [D, 128]

    bf = lambda a: a.astype(jnp.bfloat16)            # bf16 MXU operands
    return dict(
        w_patch=bf(p["w_patch"]), wqkv=bf(wqkv), wo=bf(p["wo"]),
        w1=bf(p["w1"]), w2=bf(p["w2"]), wc_pad=bf(wc_pad),
        vecs=vecs,
    )


if __name__ == "__main__":
    key = jax.random.PRNGKey(0)
    pkey, xkey = jax.random.split(key)
    params = init_params(pkey)
    kparams = prepare_params(params)          # one-time weight packing
    x = jax.random.normal(xkey, (B, C, IMG, IMG), jnp.float32)

    logits, pooler_output = wrapped_backbone_forward(x, kparams)
    jax.block_until_ready((logits, pooler_output))

    assert logits.shape == (B, NCLS) and logits.dtype == jnp.float32
    assert pooler_output.shape == (B, D) and pooler_output.dtype == jnp.float32
    print("KERNEL_OK")
</pallas_src>

<mosaic_0001>
module attributes {stable_mosaic.version = 11 : i64} {
  func.func @_fused_forward_kernel(%arg0: memref<10x192xbf16, #tpu.memory_space<vmem>>, %arg1: memref<192x32xbf16, #tpu.memory_space<vmem>>, %arg2: memref<32x96xbf16, #tpu.memory_space<vmem>>, %arg3: memref<32x32xbf16, #tpu.memory_space<vmem>>, %arg4: memref<32x64xbf16, #tpu.memory_space<vmem>>, %arg5: memref<64x32xbf16, #tpu.memory_space<vmem>>, %arg6: memref<32x128xbf16, #tpu.memory_space<vmem>>, %arg7: memref<31x128xf32, #tpu.memory_space<vmem>>, %arg8: memref<2x128xf32, #tpu.memory_space<vmem>>, %arg9: memref<2x128xf32, #tpu.memory_space<vmem>>) attributes {dimension_semantics = [], scalar_prefetch = 0 : i64, scratch_operands = 0 : i64, tpu.core_type = #tpu.core_type<tc>} {
    %c0 = arith.constant 0 : index
    %c0_0 = arith.constant 0 : index
    %0 = vector.load %arg7[%c0, %c0_0] : memref<31x128xf32, #tpu.memory_space<vmem>>, vector<31x128xf32>
    %1 = vector.extract_strided_slice %0 {offsets = [0, 0], sizes = [1, 32], strides = [1, 1]} : vector<31x128xf32> to vector<1x32xf32>
    %2 = vector.extract_strided_slice %0 {offsets = [1, 0], sizes = [1, 32], strides = [1, 1]} : vector<31x128xf32> to vector<1x32xf32>
    %3 = vector.extract_strided_slice %0 {offsets = [2, 0], sizes = [1, 96], strides = [1, 1]} : vector<31x128xf32> to vector<1x96xf32>
    %4 = vector.extract_strided_slice %0 {offsets = [3, 0], sizes = [1, 32], strides = [1, 1]} : vector<31x128xf32> to vector<1x32xf32>
    %5 = vector.extract_strided_slice %0 {offsets = [4, 0], sizes = [1, 32], strides = [1, 1]} : vector<31x128xf32> to vector<1x32xf32>
    %6 = vector.extract_strided_slice %0 {offsets = [5, 0], sizes = [1, 32], strides = [1, 1]} : vector<31x128xf32> to vector<1x32xf32>
    %7 = vector.extract_strided_slice %0 {offsets = [6, 0], sizes = [1, 64], strides = [1, 1]} : vector<31x128xf32> to vector<1x64xf32>
    %8 = vector.extract_strided_slice %0 {offsets = [7, 0], sizes = [1, 32], strides = [1, 1]} : vector<31x128xf32> to vector<1x32xf32>
    %9 = vector.extract_strided_slice %0 {offsets = [8, 0], sizes = [1, 32], strides = [1, 1]} : vector<31x128xf32> to vector<1x32xf32>
    %10 = vector.extract_strided_slice %0 {offsets = [9, 0], sizes = [1, 32], strides = [1, 1]} : vector<31x128xf32> to vector<1x32xf32>
    %11 = vector.extract_strided_slice %0 {offsets = [10, 0], sizes = [1, 128], strides = [1, 1]} : vector<31x128xf32> to vector<1x128xf32>
    %12 = vector.extract_strided_slice %0 {offsets = [11, 0], sizes = [10, 32], strides = [1, 1]} : vector<31x128xf32> to vector<10x32xf32>
    %13 = vector.extract_strided_slice %0 {offsets = [21, 0], sizes = [10, 10], strides = [1, 1]} : vector<31x128xf32> to vector<10x10xf32>
    %c0_1 = arith.constant 0 : index
    %c0_2 = arith.constant 0 : index
    %14 = vector.load %arg0[%c0_1, %c0_2] : memref<10x192xbf16, #tpu.memory_space<vmem>>, vector<10x192xbf16>
    %c0_3 = arith.constant 0 : index
    %c0_4 = arith.constant 0 : index
    %15 = vector.load %arg1[%c0_3, %c0_4] : memref<192x32xbf16, #tpu.memory_space<vmem>>, vector<192x32xbf16>
    %cst = arith.constant dense<0.000000e+00> : vector<10x32xf32>
    %16 = tpu.matmul %14, %15, %cst {dimension_numbers = #tpu.dot_dimension_numbers<[1], [0], [0], [1], [0, 0, 1, 1], [], []>} : vector<10x192xbf16>, vector<192x32xbf16>, vector<10x32xf32> -> vector<10x32xf32>
    %17 = arith.addf %16, %12 : vector<10x32xf32>
    %cst_5 = arith.constant dense<0.000000e+00> : vector<10xf32>
    %18 = vector.multi_reduction <add>, %17, %cst_5 [1] : vector<10x32xf32> to vector<10xf32>
    %19 = vector.shape_cast %18 : vector<10xf32> to vector<10x1xf32>
    %cst_6 = arith.constant 3.200000e+01 : f32
    %20 = vector.broadcast %cst_6 : f32 to vector<10x1xf32>
    %21 = arith.divf %19, %20 : vector<10x1xf32>
    %22 = vector.broadcast %21 : vector<10x1xf32> to vector<10x32xf32>
    %23 = arith.subf %17, %22 : vector<10x32xf32>
    %24 = arith.mulf %23, %23 : vector<10x32xf32>
    %cst_7 = arith.constant dense<0.000000e+00> : vector<10xf32>
    %25 = vector.multi_reduction <add>, %24, %cst_7 [1] : vector<10x32xf32> to vector<10xf32>
    %26 = vector.shape_cast %25 : vector<10xf32> to vector<10x1xf32>
    %cst_8 = arith.constant 3.200000e+01 : f32
    %27 = vector.broadcast %cst_8 : f32 to vector<10x1xf32>
    %28 = arith.divf %26, %27 : vector<10x1xf32>
    %cst_9 = arith.constant 9.99999996E-13 : f32
    %29 = vector.broadcast %cst_9 : f32 to vector<10x1xf32>
    %30 = arith.addf %28, %29 : vector<10x1xf32>
    %31 = math.rsqrt %30 : vector<10x1xf32>
    %32 = vector.broadcast %31 : vector<10x1xf32> to vector<10x32xf32>
    %33 = arith.mulf %23, %32 : vector<10x32xf32>
    %34 = vector.broadcast %1 : vector<1x32xf32> to vector<10x32xf32>
    %35 = arith.mulf %33, %34 : vector<10x32xf32>
    %36 = vector.broadcast %2 : vector<1x32xf32> to vector<10x32xf32>
    %37 = arith.addf %35, %36 : vector<10x32xf32>
    %38 = arith.truncf %37 : vector<10x32xf32> to vector<10x32xbf16>
    %c0_10 = arith.constant 0 : index
    %c0_11 = arith.constant 0 : index
    %39 = vector.load %arg2[%c0_10, %c0_11] : memref<32x96xbf16, #tpu.memory_space<vmem>>, vector<32x96xbf16>
    %cst_12 = arith.constant dense<0.000000e+00> : vector<10x96xf32>
    %40 = tpu.matmul %38, %39, %cst_12 {dimension_numbers = #tpu.dot_dimension_numbers<[1], [0], [0], [1], [0, 0, 1, 1], [], []>} : vector<10x32xbf16>, vector<32x96xbf16>, vector<10x96xf32> -> vector<10x96xf32>
    %41 = vector.broadcast %3 : vector<1x96xf32> to vector<10x96xf32>
    %42 = arith.addf %40, %41 : vector<10x96xf32>
    %43 = vector.extract_strided_slice %42 {offsets = [0, 0], sizes = [10, 16], strides = [1, 1]} : vector<10x96xf32> to vector<10x16xf32>
    %44 = vector.extract_strided_slice %42 {offsets = [0, 32], sizes = [10, 16], strides = [1, 1]} : vector<10x96xf32> to vector<10x16xf32>
    %45 = vector.extract_strided_slice %42 {offsets = [0, 64], sizes = [10, 16], strides = [1, 1]} : vector<10x96xf32> to vector<10x16xf32>
    %46 = arith.truncf %43 : vector<10x16xf32> to vector<10x16xbf16>
    %47 = arith.truncf %44 : vector<10x16xf32> to vector<10x16xbf16>
    %cst_13 = arith.constant dense<0.000000e+00> : vector<10x10xf32>
    %48 = tpu.matmul %46, %47, %cst_13 {dimension_numbers = #tpu.dot_dimension_numbers<[1], [1], [0], [0], [0, 0, 1, 0], [], []>} : vector<10x16xbf16>, vector<10x16xbf16>, vector<10x10xf32> -> vector<10x10xf32>
    %cst_14 = arith.constant 2.500000e-01 : f32
    %49 = vector.broadcast %cst_14 : f32 to vector<10x10xf32>
    %50 = arith.mulf %48, %49 : vector<10x10xf32>
    %51 = arith.addf %50, %13 : vector<10x10xf32>
    %cst_15 = arith.constant dense<0xFF800000> : vector<10xf32>
    %52 = vector.multi_reduction <maximumf>, %51, %cst_15 [1] : vector<10x10xf32> to vector<10xf32>
    %53 = vector.shape_cast %52 : vector<10xf32> to vector<10x1xf32>
    %54 = vector.broadcast %53 : vector<10x1xf32> to vector<10x10xf32>
    %55 = arith.subf %51, %54 : vector<10x10xf32>
    %56 = math.exp %55 : vector<10x10xf32>
    %cst_16 = arith.constant dense<0.000000e+00> : vector<10xf32>
    %57 = vector.multi_reduction <add>, %56, %cst_16 [1] : vector<10x10xf32> to vector<10xf32>
    %58 = vector.shape_cast %57 : vector<10xf32> to vector<10x1xf32>
    %59 = tpu.reciprocal %58 {approx = true} : vector<10x1xf32> -> vector<10x1xf32>
    %60 = vector.broadcast %59 : vector<10x1xf32> to vector<10x10xf32>
    %61 = arith.mulf %56, %60 : vector<10x10xf32>
    %62 = arith.truncf %61 : vector<10x10xf32> to vector<10x10xbf16>
    %63 = arith.truncf %45 : vector<10x16xf32> to vector<10x16xbf16>
    %cst_17 = arith.constant dense<0.000000e+00> : vector<10x16xf32>
    %64 = tpu.matmul %62, %63, %cst_17 {dimension_numbers = #tpu.dot_dimension_numbers<[1], [0], [0], [1], [0, 0, 1, 1], [], []>} : vector<10x10xbf16>, vector<10x16xbf16>, vector<10x16xf32> -> vector<10x16xf32>
    %65 = vector.extract_strided_slice %42 {offsets = [0, 16], sizes = [10, 16], strides = [1, 1]} : vector<10x96xf32> to vector<10x16xf32>
    %66 = vector.extract_strided_slice %42 {offsets = [0, 48], sizes = [10, 16], strides = [1, 1]} : vector<10x96xf32> to vector<10x16xf32>
    %67 = vector.extract_strided_slice %42 {offsets = [0, 80], sizes = [10, 16], strides = [1, 1]} : vector<10x96xf32> to vector<10x16xf32>
    %68 = arith.truncf %65 : vector<10x16xf32> to vector<10x16xbf16>
    %69 = arith.truncf %66 : vector<10x16xf32> to vector<10x16xbf16>
    %cst_18 = arith.constant dense<0.000000e+00> : vector<10x10xf32>
    %70 = tpu.matmul %68, %69, %cst_18 {dimension_numbers = #tpu.dot_dimension_numbers<[1], [1], [0], [0], [0, 0, 1, 0], [], []>} : vector<10x16xbf16>, vector<10x16xbf16>, vector<10x10xf32> -> vector<10x10xf32>
    %cst_19 = arith.constant 2.500000e-01 : f32
    %71 = vector.broadcast %cst_19 : f32 to vector<10x10xf32>
    %72 = arith.mulf %70, %71 : vector<10x10xf32>
    %73 = arith.addf %72, %13 : vector<10x10xf32>
    %cst_20 = arith.constant dense<0xFF800000> : vector<10xf32>
    %74 = vector.multi_reduction <maximumf>, %73, %cst_20 [1] : vector<10x10xf32> to vector<10xf32>
    %75 = vector.shape_cast %74 : vector<10xf32> to vector<10x1xf32>
    %76 = vector.broadcast %75 : vector<10x1xf32> to vector<10x10xf32>
    %77 = arith.subf %73, %76 : vector<10x10xf32>
    %78 = math.exp %77 : vector<10x10xf32>
    %cst_21 = arith.constant dense<0.000000e+00> : vector<10xf32>
    %79 = vector.multi_reduction <add>, %78, %cst_21 [1] : vector<10x10xf32> to vector<10xf32>
    %80 = vector.shape_cast %79 : vector<10xf32> to vector<10x1xf32>
    %81 = tpu.reciprocal %80 {approx = true} : vector<10x1xf32> -> vector<10x1xf32>
    %82 = vector.broadcast %81 : vector<10x1xf32> to vector<10x10xf32>
    %83 = arith.mulf %78, %82 : vector<10x10xf32>
    %84 = arith.truncf %83 : vector<10x10xf32> to vector<10x10xbf16>
    %85 = arith.truncf %67 : vector<10x16xf32> to vector<10x16xbf16>
    %cst_22 = arith.constant dense<0.000000e+00> : vector<10x16xf32>
    %86 = tpu.matmul %84, %85, %cst_22 {dimension_numbers = #tpu.dot_dimension_numbers<[1], [0], [0], [1], [0, 0, 1, 1], [], []>} : vector<10x10xbf16>, vector<10x16xbf16>, vector<10x16xf32> -> vector<10x16xf32>
    %87 = tpu.concatenate %64, %86 in 1 : vector<10x16xf32>, vector<10x16xf32> -> vector<10x32xf32>
    %88 = arith.truncf %87 : vector<10x32xf32> to vector<10x32xbf16>
    %c0_23 = arith.constant 0 : index
    %c0_24 = arith.constant 0 : index
    %89 = vector.load %arg3[%c0_23, %c0_24] : memref<32x32xbf16, #tpu.memory_space<vmem>>, vector<32x32xbf16>
    %cst_25 = arith.constant dense<0.000000e+00> : vector<10x32xf32>
    %90 = tpu.matmul %88, %89, %cst_25 {dimension_numbers = #tpu.dot_dimension_numbers<[1], [0], [0], [1], [0, 0, 1, 1], [], []>} : vector<10x32xbf16>, vector<32x32xbf16>, vector<10x32xf32> -> vector<10x32xf32>
    %91 = vector.broadcast %4 : vector<1x32xf32> to vector<10x32xf32>
    %92 = arith.addf %90, %91 : vector<10x32xf32>
    %93 = arith.addf %17, %92 : vector<10x32xf32>
    %cst_26 = arith.constant dense<0.000000e+00> : vector<10xf32>
    %94 = vector.multi_reduction <add>, %93, %cst_26 [1] : vector<10x32xf32> to vector<10xf32>
    %95 = vector.shape_cast %94 : vector<10xf32> to vector<10x1xf32>
    %cst_27 = arith.constant 3.200000e+01 : f32
    %96 = vector.broadcast %cst_27 : f32 to vector<10x1xf32>
    %97 = arith.divf %95, %96 : vector<10x1xf32>
    %98 = vector.broadcast %97 : vector<10x1xf32> to vector<10x32xf32>
    %99 = arith.subf %93, %98 : vector<10x32xf32>
    %100 = arith.mulf %99, %99 : vector<10x32xf32>
    %cst_28 = arith.constant dense<0.000000e+00> : vector<10xf32>
    %101 = vector.multi_reduction <add>, %100, %cst_28 [1] : vector<10x32xf32> to vector<10xf32>
    %102 = vector.shape_cast %101 : vector<10xf32> to vector<10x1xf32>
    %cst_29 = arith.constant 3.200000e+01 : f32
    %103 = vector.broadcast %cst_29 : f32 to vector<10x1xf32>
    %104 = arith.divf %102, %103 : vector<10x1xf32>
    %cst_30 = arith.constant 9.99999996E-13 : f32
    %105 = vector.broadcast %cst_30 : f32 to vector<10x1xf32>
    %106 = arith.addf %104, %105 : vector<10x1xf32>
    %107 = math.rsqrt %106 : vector<10x1xf32>
    %108 = vector.broadcast %107 : vector<10x1xf32> to vector<10x32xf32>
    %109 = arith.mulf %99, %108 : vector<10x32xf32>
    %110 = vector.broadcast %5 : vector<1x32xf32> to vector<10x32xf32>
    %111 = arith.mulf %109, %110 : vector<10x32xf32>
    %112 = vector.broadcast %6 : vector<1x32xf32> to vector<10x32xf32>
    %113 = arith.addf %111, %112 : vector<10x32xf32>
    %114 = arith.truncf %113 : vector<10x32xf32> to vector<10x32xbf16>
    %c0_31 = arith.constant 0 : index
    %c0_32 = arith.constant 0 : index
    %115 = vector.load %arg4[%c0_31, %c0_32] : memref<32x64xbf16, #tpu.memory_space<vmem>>, vector<32x64xbf16>
    %cst_33 = arith.constant dense<0.000000e+00> : vector<10x64xf32>
    %116 = tpu.matmul %114, %115, %cst_33 {dimension_numbers = #tpu.dot_dimension_numbers<[1], [0], [0], [1], [0, 0, 1, 1], [], []>} : vector<10x32xbf16>, vector<32x64xbf16>, vector<10x64xf32> -> vector<10x64xf32>
    %117 = vector.broadcast %7 : vector<1x64xf32> to vector<10x64xf32>
    %118 = arith.addf %116, %117 : vector<10x64xf32>
    %cst_34 = arith.constant 5.000000e-01 : f32
    %119 = vector.broadcast %cst_34 : f32 to vector<10x64xf32>
    %120 = arith.mulf %119, %118 : vector<10x64xf32>
    %cst_35 = arith.constant 4.471500e-02 : f32
    %121 = vector.broadcast %cst_35 : f32 to vector<10x64xf32>
    %122 = arith.mulf %121, %118 : vector<10x64xf32>
    %123 = arith.mulf %122, %118 : vector<10x64xf32>
    %124 = arith.mulf %123, %118 : vector<10x64xf32>
    %125 = arith.addf %118, %124 : vector<10x64xf32>
    %cst_36 = arith.constant 0.797884583 : f32
    %126 = vector.broadcast %cst_36 : f32 to vector<10x64xf32>
    %127 = arith.mulf %126, %125 : vector<10x64xf32>
    %128 = math.tanh %127 : vector<10x64xf32>
    %cst_37 = arith.constant 1.000000e+00 : f32
    %129 = vector.broadcast %cst_37 : f32 to vector<10x64xf32>
    %130 = arith.addf %129, %128 : vector<10x64xf32>
    %131 = arith.mulf %120, %130 : vector<10x64xf32>
    %132 = arith.truncf %131 : vector<10x64xf32> to vector<10x64xbf16>
    %c0_38 = arith.constant 0 : index
    %c0_39 = arith.constant 0 : index
    %133 = vector.load %arg5[%c0_38, %c0_39] : memref<64x32xbf16, #tpu.memory_space<vmem>>, vector<64x32xbf16>
    %cst_40 = arith.constant dense<0.000000e+00> : vector<10x32xf32>
    %134 = tpu.matmul %132, %133, %cst_40 {dimension_numbers = #tpu.dot_dimension_numbers<[1], [0], [0], [1], [0, 0, 1, 1], [], []>} : vector<10x64xbf16>, vector<64x32xbf16>, vector<10x32xf32> -> vector<10x32xf32>
    %135 = arith.addf %93, %134 : vector<10x32xf32>
    %136 = vector.broadcast %8 : vector<1x32xf32> to vector<10x32xf32>
    %137 = arith.addf %135, %136 : vector<10x32xf32>
    %138 = vector.extract_strided_slice %137 {offsets = [0, 0], sizes = [1, 32], strides = [1, 1]} : vector<10x32xf32> to vector<1x32xf32>
    %139 = vector.extract_strided_slice %137 {offsets = [5, 0], sizes = [1, 32], strides = [1, 1]} : vector<10x32xf32> to vector<1x32xf32>
    %140 = tpu.concatenate %138, %139 in 0 : vector<1x32xf32>, vector<1x32xf32> -> vector<2x32xf32>
    %cst_41 = arith.constant 0.000000e+00 : f32
    %141 = vector.broadcast %cst_41 : f32 to vector<2x96xf32>
    %142 = tpu.concatenate %140, %141 in 1 : vector<2x32xf32>, vector<2x96xf32> -> vector<2x128xf32>
    %c0_42 = arith.constant 0 : index
    %c0_43 = arith.constant 0 : index
    %143 = vector.load %arg9[%c0_42, %c0_43] : memref<2x128xf32, #tpu.memory_space<vmem>>, vector<2x128xf32>
    tpu.vector_store %arg9[%c0_42, %c0_43], %142 {strides = array<i32>} : memref<2x128xf32, #tpu.memory_space<vmem>>, vector<2x128xf32>,
    %cst_44 = arith.constant dense<0.000000e+00> : vector<2xf32>
    %144 = vector.multi_reduction <add>, %140, %cst_44 [1] : vector<2x32xf32> to vector<2xf32>
    %145 = vector.shape_cast %144 : vector<2xf32> to vector<2x1xf32>
    %cst_45 = arith.constant 3.200000e+01 : f32
    %146 = vector.broadcast %cst_45 : f32 to vector<2x1xf32>
    %147 = arith.divf %145, %146 : vector<2x1xf32>
    %148 = vector.broadcast %147 : vector<2x1xf32> to vector<2x32xf32>
    %149 = arith.subf %140, %148 : vector<2x32xf32>
    %150 = arith.mulf %149, %149 : vector<2x32xf32>
    %cst_46 = arith.constant dense<0.000000e+00> : vector<2xf32>
    %151 = vector.multi_reduction <add>, %150, %cst_46 [1] : vector<2x32xf32> to vector<2xf32>
    %152 = vector.shape_cast %151 : vector<2xf32> to vector<2x1xf32>
    %cst_47 = arith.constant 3.200000e+01 : f32
    %153 = vector.broadcast %cst_47 : f32 to vector<2x1xf32>
    %154 = arith.divf %152, %153 : vector<2x1xf32>
    %cst_48 = arith.constant 9.99999996E-13 : f32
    %155 = vector.broadcast %cst_48 : f32 to vector<2x1xf32>
    %156 = arith.addf %154, %155 : vector<2x1xf32>
    %157 = math.rsqrt %156 : vector<2x1xf32>
    %158 = vector.broadcast %157 : vector<2x1xf32> to vector<2x32xf32>
    %159 = arith.mulf %149, %158 : vector<2x32xf32>
    %160 = vector.broadcast %9 : vector<1x32xf32> to vector<2x32xf32>
    %161 = arith.mulf %159, %160 : vector<2x32xf32>
    %162 = vector.broadcast %10 : vector<1x32xf32> to vector<2x32xf32>
    %163 = arith.addf %161, %162 : vector<2x32xf32>
    %164 = arith.truncf %163 : vector<2x32xf32> to vector<2x32xbf16>
    %c0_49 = arith.constant 0 : index
    %c0_50 = arith.constant 0 : index
    %165 = vector.load %arg6[%c0_49, %c0_50] : memref<32x128xbf16, #tpu.memory_space<vmem>>, vector<32x128xbf16>
    %cst_51 = arith.constant dense<0.000000e+00> : vector<2x128xf32>
    %166 = tpu.matmul %164, %165, %cst_51 {dimension_numbers = #tpu.dot_dimension_numbers<[1], [0], [0], [1], [0, 0, 1, 1], [], []>} : vector<2x32xbf16>, vector<32x128xbf16>, vector<2x128xf32> -> vector<2x128xf32>
    %167 = vector.broadcast %11 : vector<1x128xf32> to vector<2x128xf32>
    %168 = arith.addf %166, %167 : vector<2x128xf32>
    %c0_52 = arith.constant 0 : index
    %c0_53 = arith.constant 0 : index
    %169 = vector.load %arg8[%c0_52, %c0_53] : memref<2x128xf32, #tpu.memory_space<vmem>>, vector<2x128xf32>
    tpu.vector_store %arg8[%c0_52, %c0_53], %168 {strides = array<i32>} : memref<2x128xf32, #tpu.memory_space<vmem>>, vector<2x128xf32>,
    return
  }
}

</mosaic_0001>

<llo_original>
// kernel: wrapped_backbone_forward.1
$region0: #{wrapped_backbone_forward.1}
  #allocation0 [shape = 'u32[]', space=smem, size = 0x4, offset = 0x4, fixed_abs, tag = 'smem constant byte address 0x4 - core index']
  #allocation1 [shape = 'u32[72,128]{1,0:T(1,128)}', space=vmem, size = 0x9000, scoped, tag = 'internal scratch']
  %s0 = inlined_call_operand.vmem [shape: bf16[10,192], index: 0, kind: input, shape index: {}]
  %s1 = inlined_call_operand.vmem [shape: bf16[192,32], index: 1, kind: input, shape index: {}]
  %s2 = inlined_call_operand.vmem [shape: bf16[32,96], index: 2, kind: input, shape index: {}]
  %s3 = inlined_call_operand.vmem [shape: bf16[32,32], index: 3, kind: input, shape index: {}]
  %s4 = inlined_call_operand.vmem [shape: bf16[32,64], index: 4, kind: input, shape index: {}]
  %s5 = inlined_call_operand.vmem [shape: bf16[64,32], index: 5, kind: input, shape index: {}]
  %s6 = inlined_call_operand.vmem [shape: bf16[32,128], index: 6, kind: input, shape index: {}]
  %s7 = inlined_call_operand.vmem [shape: f32[31,128], index: 7, kind: input, shape index: {}]
  %s8 = inlined_call_operand.hbm [shape: f32[2,128], index: 8, kind: output, shape index: {0}]
  %s9 = inlined_call_operand.hbm [shape: f32[2,128], index: 9, kind: output, shape index: {1}]
  %10 = xla_tuple %s8, %s9
  %s11 = sld [smem:[#allocation0]]
  $region50: #{wrapped_backbone_forward.1} parent=0
    _
  %s13 = ssub.s32 1, %s11
  %s14 = scalar_select 0, %s13, %s11
  $region1: #{wrapped_backbone_forward.1} parent=0
    #allocation2 [shape = 'u8[1024]{0}', space=vmem, size = 0x400, scoped, tag = 'output window, operand 0, single buffered']
    #allocation3 [shape = 's32[1]{0}', space=sflag, size = 0x4, scoped, tag = 'scoped memory for wrapped_backbone_forward.1']
    #allocation4 [shape = 'u8[1024]{0}', space=vmem, size = 0x400, scoped, tag = 'output window, operand 1, single buffered']
    #allocation5 [shape = 's32[1]{0}', space=sflag, size = 0x4, scoped, tag = 'scoped memory for wrapped_backbone_forward.1']
    %15 = vsyncpa [#allocation3], 0
    %16 = vsyncpa [#allocation5], 0
    // Predicated region
    $region2: #{wrapped_backbone_forward.1} parent=1 // pred_check
      _
    $region3: #{wrapped_backbone_forward.1} parent=1 // pred_check_branch
      %18 = sbr.rel (0) target = $region5
    $region4: #{wrapped_backbone_forward.1} parent=1 // pred_region
      _
    $region5: #{wrapped_backbone_forward.1} parent=1 // pred_fallthru
      _
    // Predicated region
    $region6: #{wrapped_backbone_forward.1} parent=1 // pred_check
      _
    $region7: #{wrapped_backbone_forward.1} parent=1 // pred_check_branch
      %20 = sbr.rel (0) target = $region9
    $region8: #{wrapped_backbone_forward.1} parent=1 // pred_region
      _
    $region9: #{wrapped_backbone_forward.1} parent=1 // pred_fallthru
      _
    // Predicated region
    $region10: #{wrapped_backbone_forward.1} parent=1 // pred_check
      _
    $region11: #{wrapped_backbone_forward.1} parent=1 // pred_check_branch
      %22 = sbr.rel (0) target = $region13
    $region12: #{wrapped_backbone_forward.1} parent=1 // pred_region
      _
    $region13: #{wrapped_backbone_forward.1} parent=1 // pred_fallthru
      _
    // Predicated region
    $region14: #{wrapped_backbone_forward.1} parent=1 // pred_check
      _
    $region15: #{wrapped_backbone_forward.1} parent=1 // pred_check_branch
      %24 = sbr.rel (0) target = $region17
    $region16: #{wrapped_backbone_forward.1} parent=1 // pred_region
      _
    $region17: #{wrapped_backbone_forward.1} parent=1 // pred_fallthru
      _
    // Predicated region
    $region18: #{wrapped_backbone_forward.1} parent=1 // pred_check
      _
    $region19: #{wrapped_backbone_forward.1} parent=1 // pred_check_branch
      %26 = sbr.rel (0) target = $region21
    $region20: #{wrapped_backbone_forward.1} parent=1 // pred_region
      _
    $region21: #{wrapped_backbone_forward.1} parent=1 // pred_fallthru
      _
    // Predicated region
    $region22: #{wrapped_backbone_forward.1} parent=1 // pred_check
      _
    $region23: #{wrapped_backbone_forward.1} parent=1 // pred_check_branch
      %28 = sbr.rel (0) target = $region25
    $region24: #{wrapped_backbone_forward.1} parent=1 // pred_region
      _
    $region25: #{wrapped_backbone_forward.1} parent=1 // pred_fallthru
      _
    // Predicated region
    $region26: #{wrapped_backbone_forward.1} parent=1 // pred_check
      _
    $region27: #{wrapped_backbone_forward.1} parent=1 // pred_check_branch
      %30 = sbr.rel (0) target = $region29
    $region28: #{wrapped_backbone_forward.1} parent=1 // pred_region
      _
    $region29: #{wrapped_backbone_forward.1} parent=1 // pred_fallthru
      _
    // Predicated region
    $region30: #{wrapped_backbone_forward.1} parent=1 // pred_check
      _
    $region31: #{wrapped_backbone_forward.1} parent=1 // pred_check_branch
      %32 = sbr.rel (0) target = $region33
    $region32: #{wrapped_backbone_forward.1} parent=1 // pred_region
      _
    $region33: #{wrapped_backbone_forward.1} parent=1 // pred_fallthru
      _
    %v34 = vld [vmem:[%s7] sm:$0xff]
    %v35 = vld [vmem:[%s7 + $0x8] sm:$0xff]
    %v36 = vld [vmem:[%s7 + $0x10] sm:$0xff]
    %v37 = vld [vmem:[%s7 + $0x18] sm:$0x7f]
    %v38 = vld [vmem:[%s0] sm:$0xff]
    %v39 = vld [vmem:[%s0 + $0x8] sm:$0x11]
    %v40 = vld [vmem:[%s1] sm:$0xf]
    %v41 = vld [vmem:[%s1 + $0x4] sm:$0xf]
    %v42 = vld [vmem:[%s1 + $0x8] sm:$0xf]
    %v43 = vld [vmem:[%s1 + $0xc] sm:$0xf]
    %v44 = vld [vmem:[%s1 + $0x10] sm:$0xf]
    %v45 = vld [vmem:[%s1 + $0x14] sm:$0xf]
    %v46 = vld [vmem:[%s1 + $0x18] sm:$0xf]
    %v47 = vld [vmem:[%s1 + $0x1c] sm:$0xf]
    %v48 = vld [vmem:[%s1 + $0x20] sm:$0xf]
    %v49 = vld [vmem:[%s1 + $0x24] sm:$0xf]
    %v50 = vld [vmem:[%s1 + $0x28] sm:$0xf]
    %v51 = vld [vmem:[%s1 + $0x2c] sm:$0xf]
    %v52 = vld [vmem:[%s1 + $0x30] sm:$0xf]
    %v53 = vld [vmem:[%s1 + $0x34] sm:$0xf]
    %v54 = vld [vmem:[%s1 + $0x38] sm:$0xf]
    %v55 = vld [vmem:[%s1 + $0x3c] sm:$0xf]
    %v56 = vld [vmem:[%s1 + $0x40] sm:$0xf]
    %v57 = vld [vmem:[%s1 + $0x44] sm:$0xf]
    %v58 = vld [vmem:[%s1 + $0x48] sm:$0xf]
    %v59 = vld [vmem:[%s1 + $0x4c] sm:$0xf]
    %v60 = vld [vmem:[%s1 + $0x50] sm:$0xf]
    %v61 = vld [vmem:[%s1 + $0x54] sm:$0xf]
    %v62 = vld [vmem:[%s1 + $0x58] sm:$0xf]
    %v63 = vld [vmem:[%s1 + $0x5c] sm:$0xf]
    %v66 = vunpack.c.l.b16 %v38
    %v67 = vunpack.c.h.b16 %v38
    %v68 = vunpack.c.l.b16 %v39
    %v69 = vunpack.c.h.b16 %v39
    %v70 = vpack.c.b16 %v68, %v66
    %v71 = vpack.c.b16 %v69, %v67
    %v97 = vunpack.c.l.b16 %v40
    %v98 = vunpack.c.l.b16 %v41
    %v99 = vunpack.c.l.b16 %v42
    %v100 = vunpack.c.l.b16 %v43
    %v101 = vunpack.c.l.b16 %v44
    %v102 = vunpack.c.l.b16 %v45
    %v103 = vunpack.c.l.b16 %v46
    %v104 = vunpack.c.l.b16 %v47
    %v105 = vunpack.c.l.b16 %v48
    %v106 = vunpack.c.l.b16 %v49
    %v107 = vunpack.c.l.b16 %v50
    %v108 = vunpack.c.l.b16 %v51
    %v109 = vunpack.c.l.b16 %v52
    %v110 = vunpack.c.l.b16 %v53
    %v111 = vunpack.c.l.b16 %v54
    %v112 = vunpack.c.l.b16 %v55
    %v113 = vunpack.c.l.b16 %v56
    %v114 = vunpack.c.l.b16 %v57
    %v115 = vunpack.c.l.b16 %v58
    %v116 = vunpack.c.l.b16 %v59
    %v117 = vunpack.c.l.b16 %v60
    %v118 = vunpack.c.l.b16 %v61
    %v119 = vunpack.c.l.b16 %v62
    %v120 = vunpack.c.l.b16 %v63
    %v121 = vpack.c.b16 %v98, %v97
    %v122 = vpack.c.b16 %v100, %v99
    %v123 = vpack.c.b16 %v102, %v101
    %v124 = vpack.c.b16 %v104, %v103
    %v125 = vpack.c.b16 %v106, %v105
    %v126 = vpack.c.b16 %v108, %v107
    %v127 = vpack.c.b16 %v110, %v109
    %v128 = vpack.c.b16 %v112, %v111
    %v129 = vpack.c.b16 %v114, %v113
    %v130 = vpack.c.b16 %v116, %v115
    %v131 = vpack.c.b16 %v118, %v117
    %v132 = vpack.c.b16 %v120, %v119
    %vm147 = vcmask 1044480
    %v148 = vrot.slane %v35, 3
    %v149 = vrot.slane %v36, 3
    %v150 = vsel %vm147, %v148, %v149
    %vm153 = vcmask 523264
    %v155 = vsel %vm153, %v71, 0
    %157 = vmatpush.bf16.msra.mxu0 %v128
    %158 = vmatpush.bf16.msra.mxu0 %v127
    %159 = vmatpush.bf16.msra.mxu0 %v126
    %160 = vmatpush.bf16.msra.mxu0 %v125
    %161 = vmatpush.bf16.msra.mxu0 %v124
    %162 = vmatpush.bf16.msra.mxu0 %v123
    %163 = vmatpush.bf16.msra.mxu0 %v122
    %164 = vmatpush.bf16.msra.mxu0 %v121
    %165 = vmatmul.bf16.gmra.mxu0 %v70
    %v166 = vpop.f32.mrf.mxu0
    %v167 = vadd.f32 %v150, %v166
    %v168 = vpop.f32.mrf.mxu0
    %v169 = vadd.f32 %v149, %v168
    %170 = vdwg.mxu0
    %171 = vmatpush.bf16.msra.mxu0 0
    %172 = vmatpush.bf16.msra.mxu0 0
    %173 = vmatpush.bf16.msra.mxu0 0
    %174 = vmatpush.bf16.msra.mxu0 0
    %175 = vmatpush.bf16.msra.mxu0 %v132
    %176 = vmatpush.bf16.msra.mxu0 %v131
    %177 = vmatpush.bf16.msra.mxu0 %v130
    %178 = vmatpush.bf16.msra.mxu0 %v129
    %179 = vmatmul.bf16.gmra.mxu0 %v155
    %v180 = vpop.f32.mrf.mxu0
    %v181 = vadd.f32 %v167, %v180
    %v182 = vpop.f32.mrf.mxu0
    %v183 = vadd.f32 %v169, %v182
    %184 = vdwg.mxu0
    %vm185 = vcmask 261120
    %v186 = vsel %vm185, %v181, 0.0
    %187 = vadd.xlane.f32.xlu0 %v186
    %v188 = vpop.xlane.xlu0 %187
    %vm189 = vcmask 254976
    %v190 = vsel %vm189, %v183, 0.0
    %191 = vadd.xlane.f32.xlu0 %v190
    %v192 = vpop.xlane.xlu0 %191
    %v193 = vrcp.pop 32.0
    %v194 = vmul.f32 32.0, %v193
    %v195 = vsub.f32 1.0, %v194
    %v196 = vmul.f32 %v193, %v195
    %v197 = vadd.f32 %v193, %v196
    %vm198 = vweird.f32 %v193
    %v199 = vsel %vm198, %v193, %v197
    %v200 = vmul.f32 %v188, %v199
    %v201 = vmul.f32 %v192, %v199
    %v202 = vsub.f32 %v181, %v200
    %v203 = vsub.f32 %v183, %v201
    %v204 = vmul.f32 %v202, %v202
    %v205 = vmul.f32 %v203, %v203
    %v206 = vsel %vm185, %v204, 0.0
    %207 = vadd.xlane.f32.xlu0 %v206
    %v208 = vpop.xlane.xlu0 %207
    %v209 = vsel %vm189, %v205, 0.0
    %210 = vadd.xlane.f32.xlu0 %v209
    %v211 = vpop.xlane.xlu0 %210
    %v212 = vmul.f32 %v208, %v199
    %v213 = vmul.f32 %v211, %v199
    %v214 = vadd.f32 %v212, 1e-12
    %v215 = vadd.f32 %v213, 1e-12
    %v216 = vrsqrt.pop %v214
    %v217 = vmul.f32 %v216, %v214
    %v218 = vmul.f32 %v217, %v216
    %v219 = vmul.f32 0.5, %v218
    %v220 = vsub.f32 1.5, %v219
    %v221 = vmul.f32 %v216, %v220
    %vm222 = vweird.f32 %v214
    %vm223 = vweird.f32 %v216
    %vm224 = vmor %vm222, %vm223
    %v225 = vsel %vm224, %v216, %v221
    %v226 = vrsqrt.pop %v215
    %v227 = vmul.f32 %v226, %v215
    %v228 = vmul.f32 %v227, %v226
    %v229 = vmul.f32 0.5, %v228
    %v230 = vsub.f32 1.5, %v229
    %v231 = vmul.f32 %v226, %v230
    %vm232 = vweird.f32 %v215
    %vm233 = vweird.f32 %v226
    %vm234 = vmor %vm232, %vm233
    %v235 = vsel %vm234, %v226, %v231
    %v236 = vmul.f32 %v202, %v225
    %v237 = vmul.f32 %v203, %v235
    %v238 = vperm.slane %v34, 0
    %v239 = vmul.f32 %v236, %v238
    %v240 = vmul.f32 %v237, %v238
    %v241 = vperm.slane %v34, 1
    %v242 = vadd.f32 %v239, %v241
    %v243 = vadd.f32 %v240, %v241
    %v244 = vpack.c.bf16 %v243, %v242
    %v245 = vld [vmem:[%s2] sm:$0xf]
    %v246 = vld [vmem:[%s2 + $0x4] sm:$0xf]
    %v247 = vld [vmem:[%s2 + $0x8] sm:$0xf]
    %v248 = vld [vmem:[%s2 + $0xc] sm:$0xf]
    %v249 = vperm.slane %v34, 2
    %v254 = vunpack.c.l.b16 %v245
    %v255 = vunpack.c.l.b16 %v246
    %v256 = vunpack.c.l.b16 %v247
    %v257 = vunpack.c.l.b16 %v248
    %v258 = vpack.c.b16 %v255, %v254
    %v259 = vpack.c.b16 %v257, %v256
    %v263 = vsel %vm185, %v244, 0
    %265 = vmatpush.bf16.msra.mxu0 0
    %266 = vmatpush.bf16.msra.mxu0 0
    %267 = vmatpush.bf16.msra.mxu0 0
    %268 = vmatpush.bf16.msra.mxu0 0
    %269 = vmatpush.bf16.msra.mxu0 0
    %270 = vmatpush.bf16.msra.mxu0 0
    %271 = vmatpush.bf16.msra.mxu0 %v259
    %272 = vmatpush.bf16.msra.mxu0 %v258
    %273 = vmatmul.bf16.gmra.mxu0 %v263
    %v274 = vpop.f32.mrf.mxu0
    %v275 = vadd.f32 %v249, %v274
    %v276 = vpop.f32.mrf.mxu0
    %v277 = vadd.f32 %v249, %v276
    %278 = vdwg.mxu0
    %v279 = vpack.c.bf16 %v277, %v275
    %281 = vrot.lane.b32.xlu0 %v279, 96
    %v282 = vpop.permute.xlu0 %281
    %vm283 = vcmask 130048
    %v285 = vsel %vm283, %v279, 0
    %v288 = vsel %vm283, %v282, 0
    %290 = vmatpush.bf16.xpose.msra.mxu0 0
    %291 = vmatpush.bf16.xpose.msra.mxu0 0
    %292 = vmatpush.bf16.xpose.msra.mxu0 0
    %293 = vmatpush.bf16.xpose.msra.mxu0 0
    %294 = vmatpush.bf16.xpose.msra.mxu0 0
    %295 = vmatpush.bf16.xpose.msra.mxu0 0
    %296 = vmatpush.bf16.xpose.msra.mxu0 0
    %297 = vmatpush.bf16.xpose.msra.mxu0 %v288
    %298 = vmatmul.bf16.gmra.mxu0 %v285
    %v299 = vpop.f32.mrf.mxu0
    %v300 = vadd.f32 0.0, %v299
    %v301 = vpop.f32.mrf.mxu0
    %v302 = vadd.f32 0.0, %v301
    %303 = vdwg.mxu0
    %v304 = vmul.f32 %v300, 0.25
    %v305 = vmul.f32 %v302, 0.25
    %vm307 = vcmask 1042432
    %v308 = vrot.slane %v36, 5
    %v309 = vrot.slane %v37, 5
    %v310 = vsel %vm307, %v308, %v309
    %v313 = vadd.f32 %v304, %v310
    %v314 = vadd.f32 %v305, %v309
    %vm315 = vcmask 80896
    %v316 = vsel %vm315, %v313, -inf
    %317 = vmax.xlane.f32.xlu0 %v316
    %v318 = vpop.xlane.xlu0 %317
    %vm319 = vcmask 74752
    %v320 = vsel %vm319, %v314, -inf
    %321 = vmax.xlane.f32.xlu0 %v320
    %v322 = vpop.xlane.xlu0 %321
    %v323 = vsub.f32 %v313, %v318
    %v324 = vsub.f32 %v314, %v322
    %v325 = vmul.f32 %v323, 1.442695
    %v326 = vpow.pop %v325
    %v327 = vmul.f32 %v324, 1.442695
    %v328 = vpow.pop %v327
    %v329 = vsel %vm315, %v326, 0.0
    %330 = vadd.xlane.f32.xlu0 %v329
    %v331 = vpop.xlane.xlu0 %330
    %v332 = vsel %vm319, %v328, 0.0
    %333 = vadd.xlane.f32.xlu0 %v332
    %v334 = vpop.xlane.xlu0 %333
    %v335 = vrcp.pop %v331
    %v336 = vrcp.pop %v334
    %v337 = vmul.f32 %v326, %v335
    %v338 = vmul.f32 %v328, %v336
    %v339 = vpack.c.bf16 %v338, %v337
    %340 = vrot.lane.b32.xlu0 %v279, 64
    %v341 = vpop.permute.xlu0 %340
    %v343 = vsel %vm315, %v339, 0
    %v346 = vsel %vm147, %v341, 0
    %348 = vmatpush.bf16.msra.mxu0 0
    %349 = vmatpush.bf16.msra.mxu0 0
    %350 = vmatpush.bf16.msra.mxu0 0
    %351 = vmatpush.bf16.msra.mxu0 0
    %352 = vmatpush.bf16.msra.mxu0 0
    %353 = vmatpush.bf16.msra.mxu0 0
    %354 = vmatpush.bf16.msra.mxu0 0
    %355 = vmatpush.bf16.msra.mxu0 %v346
    %356 = vmatmul.bf16.gmra.mxu0 %v343
    %v357 = vpop.f32.mrf.mxu0
    %v358 = vadd.f32 0.0, %v357
    %v359 = vpop.f32.mrf.mxu0
    %v360 = vadd.f32 0.0, %v359
    %361 = vdwg.mxu0
    %362 = vrot.lane.b32.xlu0 %v279, 112
    %v363 = vpop.permute.xlu0 %362
    %364 = vrot.lane.b32.xlu0 %v279, 80
    %v365 = vpop.permute.xlu0 %364
    %v367 = vsel %vm283, %v363, 0
    %v370 = vsel %vm283, %v365, 0
    %372 = vmatpush.bf16.xpose.msra.mxu0 0
    %373 = vmatpush.bf16.xpose.msra.mxu0 0
    %374 = vmatpush.bf16.xpose.msra.mxu0 0
    %375 = vmatpush.bf16.xpose.msra.mxu0 0
    %376 = vmatpush.bf16.xpose.msra.mxu0 0
    %377 = vmatpush.bf16.xpose.msra.mxu0 0
    %378 = vmatpush.bf16.xpose.msra.mxu0 0
    %379 = vmatpush.bf16.xpose.msra.mxu0 %v370
    %380 = vmatmul.bf16.gmra.mxu0 %v367
    %v381 = vpop.f32.mrf.mxu0
    %v382 = vadd.f32 0.0, %v381
    %v383 = vpop.f32.mrf.mxu0
    %v384 = vadd.f32 0.0, %v383
    %385 = vdwg.mxu0
    %v386 = vmul.f32 %v382, 0.25
    %v387 = vmul.f32 %v384, 0.25
    %v388 = vadd.f32 %v386, %v310
    %v389 = vadd.f32 %v387, %v309
    %v390 = vsel %vm315, %v388, -inf
    %391 = vmax.xlane.f32.xlu0 %v390
    %v392 = vpop.xlane.xlu0 %391
    %v393 = vsel %vm319, %v389, -inf
    %394 = vmax.xlane.f32.xlu0 %v393
    %v395 = vpop.xlane.xlu0 %394
    %v396 = vsub.f32 %v388, %v392
    %v397 = vsub.f32 %v389, %v395
    %v398 = vmul.f32 %v396, 1.442695
    %v399 = vpow.pop %v398
    %v400 = vmul.f32 %v397, 1.442695
    %v401 = vpow.pop %v400
    %v402 = vsel %vm315, %v399, 0.0
    %403 = vadd.xlane.f32.xlu0 %v402
    %v404 = vpop.xlane.xlu0 %403
    %v405 = vsel %vm319, %v401, 0.0
    %406 = vadd.xlane.f32.xlu0 %v405
    %v407 = vpop.xlane.xlu0 %406
    %v408 = vrcp.pop %v404
    %v409 = vrcp.pop %v407
    %v410 = vmul.f32 %v399, %v408
    %v411 = vmul.f32 %v401, %v409
    %v412 = vpack.c.bf16 %v411, %v410
    %413 = vrot.lane.b32.xlu0 %v279, 48
    %v414 = vpop.permute.xlu0 %413
    %v416 = vsel %vm315, %v412, 0
    %v419 = vsel %vm147, %v414, 0
    %421 = vmatpush.bf16.msra.mxu0 0
    %422 = vmatpush.bf16.msra.mxu0 0
    %423 = vmatpush.bf16.msra.mxu0 0
    %424 = vmatpush.bf16.msra.mxu0 0
    %425 = vmatpush.bf16.msra.mxu0 0
    %426 = vmatpush.bf16.msra.mxu0 0
    %427 = vmatpush.bf16.msra.mxu0 0
    %428 = vmatpush.bf16.msra.mxu0 %v419
    %429 = vmatmul.bf16.gmra.mxu0 %v416
    %v430 = vpop.f32.mrf.mxu0
    %v431 = vadd.f32 0.0, %v430
    %v432 = vpop.f32.mrf.mxu0
    %v433 = vadd.f32 0.0, %v432
    %434 = vdwg.mxu0
    %437 = vrot.lane.b32.xlu0 %v431, 16
    %v438 = vpop.permute.xlu0 %437
    %439 = vrot.lane.b32.xlu0 %v433, 16
    %v440 = vpop.permute.xlu0 %439
    %v443 = vsel %vm283, %v358, %v438
    %v444 = vsel %vm283, %v360, %v440
    %v445 = vpack.c.bf16 %v444, %v443
    %v446 = vld [vmem:[%s3] sm:$0xf]
    %v447 = vld [vmem:[%s3 + $0x4] sm:$0xf]
    %v448 = vld [vmem:[%s3 + $0x8] sm:$0xf]
    %v449 = vld [vmem:[%s3 + $0xc] sm:$0xf]
    %v450 = vperm.slane %v34, 3
    %v455 = vunpack.c.l.b16 %v446
    %v456 = vunpack.c.l.b16 %v447
    %v457 = vunpack.c.l.b16 %v448
    %v458 = vunpack.c.l.b16 %v449
    %v459 = vpack.c.b16 %v456, %v455
    %v460 = vpack.c.b16 %v458, %v457
    %v464 = vsel %vm185, %v445, 0
    %466 = vmatpush.bf16.msra.mxu0 0
    %467 = vmatpush.bf16.msra.mxu0 0
    %468 = vmatpush.bf16.msra.mxu0 0
    %469 = vmatpush.bf16.msra.mxu0 0
    %470 = vmatpush.bf16.msra.mxu0 0
    %471 = vmatpush.bf16.msra.mxu0 0
    %472 = vmatpush.bf16.msra.mxu0 %v460
    %473 = vmatpush.bf16.msra.mxu0 %v459
    %474 = vmatmul.bf16.gmra.mxu0 %v464
    %v475 = vpop.f32.mrf.mxu0
    %v476 = vadd.f32 %v450, %v475
    %v477 = vpop.f32.mrf.mxu0
    %v478 = vadd.f32 %v450, %v477
    %479 = vdwg.mxu0
    %v480 = vadd.f32 %v181, %v476
    %v481 = vadd.f32 %v183, %v478
    %v482 = vsel %vm185, %v480, 0.0
    %483 = vadd.xlane.f32.xlu0 %v482
    %v484 = vpop.xlane.xlu0 %483
    %v485 = vsel %vm189, %v481, 0.0
    %486 = vadd.xlane.f32.xlu0 %v485
    %v487 = vpop.xlane.xlu0 %486
    %v488 = vmul.f32 %v484, %v199
    %v489 = vmul.f32 %v487, %v199
    %v490 = vsub.f32 %v480, %v488
    %v491 = vsub.f32 %v481, %v489
    %v492 = vmul.f32 %v490, %v490
    %v493 = vmul.f32 %v491, %v491
    %v494 = vsel %vm185, %v492, 0.0
    %495 = vadd.xlane.f32.xlu0 %v494
    %v496 = vpop.xlane.xlu0 %495
    %v497 = vsel %vm189, %v493, 0.0
    %498 = vadd.xlane.f32.xlu0 %v497
    %v499 = vpop.xlane.xlu0 %498
    %v500 = vmul.f32 %v496, %v199
    %v501 = vmul.f32 %v499, %v199
    %v502 = vadd.f32 %v500, 1e-12
    %v503 = vadd.f32 %v501, 1e-12
    %v504 = vrsqrt.pop %v502
    %v505 = vmul.f32 %v504, %v502
    %v506 = vmul.f32 %v505, %v504
    %v507 = vmul.f32 0.5, %v506
    %v508 = vsub.f32 1.5, %v507
    %v509 = vmul.f32 %v504, %v508
    %vm510 = vweird.f32 %v502
    %vm511 = vweird.f32 %v504
    %vm512 = vmor %vm510, %vm511
    %v513 = vsel %vm512, %v504, %v509
    %v514 = vrsqrt.pop %v503
    %v515 = vmul.f32 %v514, %v503
    %v516 = vmul.f32 %v515, %v514
    %v517 = vmul.f32 0.5, %v516
    %v518 = vsub.f32 1.5, %v517
    %v519 = vmul.f32 %v514, %v518
    %vm520 = vweird.f32 %v503
    %vm521 = vweird.f32 %v514
    %vm522 = vmor %vm520, %vm521
    %v523 = vsel %vm522, %v514, %v519
    %v524 = vmul.f32 %v490, %v513
    %v525 = vmul.f32 %v491, %v523
    %v526 = vperm.slane %v34, 4
    %v527 = vmul.f32 %v524, %v526
    %v528 = vmul.f32 %v525, %v526
    %v529 = vperm.slane %v34, 5
    %v530 = vadd.f32 %v527, %v529
    %v531 = vadd.f32 %v528, %v529
    %v532 = vpack.c.bf16 %v531, %v530
    %v533 = vld [vmem:[%s4] sm:$0xf]
    %v534 = vld [vmem:[%s4 + $0x4] sm:$0xf]
    %v535 = vld [vmem:[%s4 + $0x8] sm:$0xf]
    %v536 = vld [vmem:[%s4 + $0xc] sm:$0xf]
    %v537 = vperm.slane %v34, 6
    %v542 = vunpack.c.l.b16 %v533
    %v543 = vunpack.c.l.b16 %v534
    %v544 = vunpack.c.l.b16 %v535
    %v545 = vunpack.c.l.b16 %v536
    %v546 = vpack.c.b16 %v543, %v542
    %v547 = vpack.c.b16 %v545, %v544
    %v551 = vsel %vm185, %v532, 0
    %553 = vmatpush.bf16.msra.mxu0 0
    %554 = vmatpush.bf16.msra.mxu0 0
    %555 = vmatpush.bf16.msra.mxu0 0
    %556 = vmatpush.bf16.msra.mxu0 0
    %557 = vmatpush.bf16.msra.mxu0 0
    %558 = vmatpush.bf16.msra.mxu0 0
    %559 = vmatpush.bf16.msra.mxu0 %v547
    %560 = vmatpush.bf16.msra.mxu0 %v546
    %561 = vmatmul.bf16.gmra.mxu0 %v551
    %v562 = vpop.f32.mrf.mxu0
    %v563 = vadd.f32 %v537, %v562
    %v564 = vpop.f32.mrf.mxu0
    %v565 = vadd.f32 %v537, %v564
    %566 = vdwg.mxu0
    %v567 = vmul.f32 %v563, 0.5
    %v568 = vmul.f32 %v565, 0.5
    %v569 = vmul.f32 %v563, 0.044715
    %v570 = vmul.f32 %v565, 0.044715
    %v571 = vmul.f32 %v569, %v563
    %v572 = vmul.f32 %v570, %v565
    %v573 = vmul.f32 %v571, %v563
    %v574 = vmul.f32 %v572, %v565
    %v575 = vadd.f32 %v563, %v573
    %v576 = vadd.f32 %v565, %v574
    %v577 = vmul.f32 %v575, 0.7978846
    %v578 = vmul.f32 %v576, 0.7978846
    %v579 = vtanh.pop %v577
    %v580 = vtanh.pop %v578
    %v581 = vadd.f32 %v579, 1.0
    %v582 = vadd.f32 %v580, 1.0
    %v583 = vmul.f32 %v567, %v581
    %v584 = vmul.f32 %v568, %v582
    %v585 = vpack.c.bf16 %v584, %v583
    %v586 = vld [vmem:[%s5] sm:$0xf]
    %v587 = vld [vmem:[%s5 + $0x4] sm:$0xf]
    %v588 = vld [vmem:[%s5 + $0x8] sm:$0xf]
    %v589 = vld [vmem:[%s5 + $0xc] sm:$0xf]
    %v590 = vld [vmem:[%s5 + $0x10] sm:$0xf]
    %v591 = vld [vmem:[%s5 + $0x14] sm:$0xf]
    %v592 = vld [vmem:[%s5 + $0x18] sm:$0xf]
    %v593 = vld [vmem:[%s5 + $0x1c] sm:$0xf]
    %v602 = vunpack.c.l.b16 %v586
    %v603 = vunpack.c.l.b16 %v587
    %v604 = vunpack.c.l.b16 %v588
    %v605 = vunpack.c.l.b16 %v589
    %v606 = vunpack.c.l.b16 %v590
    %v607 = vunpack.c.l.b16 %v591
    %v608 = vunpack.c.l.b16 %v592
    %v609 = vunpack.c.l.b16 %v593
    %v610 = vpack.c.b16 %v603, %v602
    %v611 = vpack.c.b16 %v605, %v604
    %v612 = vpack.c.b16 %v607, %v606
    %v613 = vpack.c.b16 %v609, %v608
    %v619 = vsel %vm153, %v585, 0
    %621 = vmatpush.bf16.msra.mxu0 0
    %622 = vmatpush.bf16.msra.mxu0 0
    %623 = vmatpush.bf16.msra.mxu0 0
    %624 = vmatpush.bf16.msra.mxu0 0
    %625 = vmatpush.bf16.msra.mxu0 %v613
    %626 = vmatpush.bf16.msra.mxu0 %v612
    %627 = vmatpush.bf16.msra.mxu0 %v611
    %628 = vmatpush.bf16.msra.mxu0 %v610
    %629 = vmatmul.bf16.gmra.mxu0 %v619
    %v630 = vpop.f32.mrf.mxu0
    %v631 = vadd.f32 0.0, %v630
    %v632 = vpop.f32.mrf.mxu0
    %633 = vdwg.mxu0
    %v634 = vadd.f32 %v480, %v631
    %v635 = vperm.slane %v34, 7
    %v636 = vadd.f32 %v634, %v635
    %v638 = vrot.slane %v636, 4
    %vm640 = vcmask 1040384
    %v641 = vsel %vm640, %v636, %v638
    %v642 = vsel %vm185, %v641, 0.0
    %643 = vst [vmem:[#allocation4] sm:$0x3] %v642
    %v644 = vsel %vm189, %v641, 0.0
    %645 = vadd.xlane.f32.xlu0 %v644
    %v646 = vpop.xlane.xlu0 %645
    %v647 = vmul.f32 %v646, %v199
    %v648 = vsub.f32 %v641, %v647
    %v649 = vmul.f32 %v648, %v648
    %v650 = vsel %vm189, %v649, 0.0
    %651 = vadd.xlane.f32.xlu0 %v650
    %v652 = vpop.xlane.xlu0 %651
    %v653 = vmul.f32 %v652, %v199
    %v654 = vadd.f32 %v653, 1e-12
    %v655 = vrsqrt.pop %v654
    %v656 = vmul.f32 %v655, %v654
    %v657 = vmul.f32 %v656, %v655
    %v658 = vmul.f32 0.5, %v657
    %v659 = vsub.f32 1.5, %v658
    %v660 = vmul.f32 %v655, %v659
    %vm661 = vweird.f32 %v654
    %vm662 = vweird.f32 %v655
    %vm663 = vmor %vm661, %vm662
    %v664 = vsel %vm663, %v655, %v660
    %v665 = vmul.f32 %v648, %v664
    %v666 = vperm.slane %v35, 0
    %v667 = vmul.f32 %v665, %v666
    %v668 = vperm.slane %v35, 1
    %v669 = vadd.f32 %v667, %v668
    %v670 = vpack.c.bf16 %v669, %v669
    %v671 = vld [vmem:[%s6] sm:$0xf]
    %v672 = vld [vmem:[%s6 + $0x4] sm:$0xf]
    %v673 = vld [vmem:[%s6 + $0x8] sm:$0xf]
    %v674 = vld [vmem:[%s6 + $0xc] sm:$0xf]
    %v675 = vperm.slane %v35, 2
    %v680 = vunpack.c.l.b16 %v671
    %v681 = vunpack.c.l.b16 %v672
    %v682 = vunpack.c.l.b16 %v673
    %v683 = vunpack.c.l.b16 %v674
    %v684 = vpack.c.b16 %v681, %v680
    %v685 = vpack.c.b16 %v683, %v682
    %v689 = vsel %vm185, %v670, 0
    %691 = vmatpush.bf16.msra.mxu0 0
    %692 = vmatpush.bf16.msra.mxu0 0
    %693 = vmatpush.bf16.msra.mxu0 0
    %694 = vmatpush.bf16.msra.mxu0 0
    %695 = vmatpush.bf16.msra.mxu0 0
    %696 = vmatpush.bf16.msra.mxu0 0
    %697 = vmatpush.bf16.msra.mxu0 %v685
    %698 = vmatpush.bf16.msra.mxu0 %v684
    %699 = vmatmul.bf16.gmra.mxu0 %v689
    %v700 = vpop.f32.mrf.mxu0
    %v701 = vadd.f32 %v675, %v700
    %v702 = vpop.f32.mrf.mxu0
    %703 = vdwg.mxu0
    %704 = vst [vmem:[#allocation2] sm:$0x3] %v701
    // Predicated region
    $region34: #{wrapped_backbone_forward.1} parent=1 // pred_check
      _
    $region35: #{wrapped_backbone_forward.1} parent=1 // pred_check_branch
      %706 = sbr.rel (0) target = $region37
    $region36: #{wrapped_backbone_forward.1} parent=1 // pred_region
      %708 = vsyncadd [#allocation3], 0
      %s710 = sshll.u32 [#allocation2], 4
      %s711 = int_to_ptr.vmem [resolvable:$true] %s710
      %s712 = sshll.u32 %s8, 4
      %s713 = int_to_ptr.hbm [resolvable:$true] %s712
      %715 = dma.vmem_to_hbm [thread:$0]  %s711, 32, %s713, [#allocation3]
    $region37: #{wrapped_backbone_forward.1} parent=1 // pred_fallthru
      _
    // Predicated region
    $region38: #{wrapped_backbone_forward.1} parent=1 // pred_check
      _
    $region39: #{wrapped_backbone_forward.1} parent=1 // pred_check_branch
      %717 = sbr.rel (0) target = $region41
    $region40: #{wrapped_backbone_forward.1} parent=1 // pred_region
      %719 = vsyncadd [#allocation5], 0
      %s721 = sshll.u32 [#allocation4], 4
      %s722 = int_to_ptr.vmem [resolvable:$true] %s721
      %s723 = sshll.u32 %s9, 4
      %s724 = int_to_ptr.hbm [resolvable:$true] %s723
      %726 = dma.vmem_to_hbm [thread:$0]  %s722, 32, %s724, [#allocation5]
    $region41: #{wrapped_backbone_forward.1} parent=1 // pred_fallthru
      _
    // Predicated region
    $region42: #{wrapped_backbone_forward.1} parent=1 // pred_check
      _
    $region43: #{wrapped_backbone_forward.1} parent=1 // pred_check_branch
      %728 = sbr.rel (0) target = $region45
    $region44: #{wrapped_backbone_forward.1} parent=1 // pred_region
      %730 = dma.done [#allocation3], 32
    $region45: #{wrapped_backbone_forward.1} parent=1 // pred_fallthru
      _
    // Predicated region
    $region46: #{wrapped_backbone_forward.1} parent=1 // pred_check
      _
    $region47: #{wrapped_backbone_forward.1} parent=1 // pred_check_branch
      %732 = sbr.rel (0) target = $region49
    $region48: #{wrapped_backbone_forward.1} parent=1 // pred_region
      %734 = dma.done [#allocation5], 32
    $region49: #{wrapped_backbone_forward.1} parent=1 // pred_fallthru
      _
    %735 = vsyncpa [#allocation3], 1
    %736 = vsyncpa [#allocation5], 1

</llo_original>
